<compile_context>
chip_gen: v7x
topology: tpu7x:2x2x1
jax: 0.10.0
libtpu: 0.0.40
codegen_flags: <defaults>
</compile_context>

<pallas_src>
import math

import numpy as np
import jax
import jax.numpy as jnp
from jax import lax
from jax.experimental import pallas as pl
from jax.experimental.pallas import tpu as pltpu


# ---------------- config (mirrors `args` of the PyTorch module) ----------------
HEAD_DIM = 32
ATTN_LIM = 64            # args.attn_lim  (local attention span L)
COMPRESS_RATE = 4        # args.compress_rate (c)
COMPRESS_SIZE = 32       # args.compress_size
C_SLOTS = COMPRESS_SIZE // COMPRESS_RATE   # C
BATCH = 2
M = 32                   # query block length, M % c == 0
# TODO(synk): nn.Dropout is treated as identity (eval mode / p = 0).


# ---------------- skew / unskew helpers (pure data movement, JAX glue) ----------
def _skew(X, pad_value):
    B, Mr, L = X.shape
    X = jnp.pad(X, ((0, 0), (0, 0), (0, Mr + 1)), constant_values=pad_value)
    X = X.reshape(B, -1)[:, :-Mr]
    return X.reshape(B, Mr, L + Mr)


def _unskew(X):
    B, Mr, LpM = X.shape
    L = LpM - Mr
    X = X.reshape(B, -1)
    X = jnp.pad(X, ((0, 0), (0, Mr)))
    X = X.reshape(B, Mr, LpM + 1)
    return X[:, :, :L]


def _skew_step(X, step, pad_value):
    B, Mr, _ = X.shape
    X = X.reshape(B, Mr // step, step, -1)
    X = jnp.swapaxes(X, 1, 2).reshape(B * step, Mr // step, -1)
    X = _skew(X, pad_value)
    X = X[:, :, :-1]
    X = X.reshape(B, step, Mr // step, -1)
    X = jnp.swapaxes(X, 1, 2).reshape(B, Mr, -1)
    return X


def _unskew_step(X, step):
    B, Mr, _ = X.shape
    X = X.reshape(B, Mr // step, step, -1)
    X = jnp.swapaxes(X, 1, 2).reshape(B * step, Mr // step, -1)
    X = jnp.pad(X, ((0, 0), (0, 0), (0, 1)))
    X = _unskew(X)
    X = X.reshape(B, step, Mr // step, -1)
    X = jnp.swapaxes(X, 1, 2).reshape(B, Mr, -1)
    return X


# ---------------- compile-time band mask (additive bias) ----------------
def _band_bias(Mq, c, C, attn_lim, kc, kl, kp):
    """-1e30 on invalid (query, key-column) pairs in the concatenated+padded
    absolute-column layout; 0 on valid positions.  Static numpy constant."""
    rows = np.arange(Mq)[:, None]
    cols = np.arange(kp)[None, :]
    base = rows // c
    valid_c = (cols >= base) & (cols <= base + C) & (cols < kc)
    lcol = cols - kc
    valid_l = (lcol >= rows) & (lcol < rows + attn_lim) & (cols >= kc) & (cols < kc + kl)
    valid = valid_c | valid_l
    return np.where(valid, 0.0, -1e30).astype(np.float32)


# ---------------- Pallas kernel (single fused attention step) ----------------
def _seq_attn_kernel(q_ref, k_ref, v_ref, pe_ref, out_ref):
    q = q_ref[...]       # (B, M, H)    bf16, already scaled by 1/sqrt(H)
    k = k_ref[...]       # (B, Kp, H)   bf16, [compressed ; local ; zero-pad]
    v = v_ref[...]       # (B, Kp, H)   bf16
    pe = pe_ref[...]     # (B, M, Kp)   f32, positional logits + (-1e30) band bias

    # scores: one batched MXU matmul over the full 128-wide key axis
    s = jnp.einsum('bmh,bkh->bmk', q, k,
                   preferred_element_type=jnp.float32) + pe

    # masked softmax (masked logits are ~-1e30 -> exp underflows to exactly 0)
    m = jnp.max(s, axis=-1, keepdims=True)
    e = jnp.exp(s - m)
    denom = jnp.sum(e, axis=-1, keepdims=True)

    # unnormalized probs @ values, then deferred normalization via EUP reciprocal
    pv = jnp.einsum('bmk,bkh->bmh', e.astype(v.dtype), v,
                    preferred_element_type=jnp.float32)
    out_ref[...] = (pv * pl.reciprocal(denom, approx=True)).astype(out_ref.dtype)


# ---------------- wrapper ----------------
def seq_attention_forward(query, key, value, ckey, cvalue, key_pe, *,
                          compress_rate, compress_size, attn_lim):
    B, Mq, H = query.shape
    c = compress_rate
    C = compress_size // compress_rate
    Kl = key.shape[1]           # attn_lim + M
    Kc = ckey.shape[1]          # C + M // c
    P = attn_lim + C + 1
    assert Mq % c == 0
    assert Kl == attn_lim + Mq and Kc == C + Mq // c
    assert key_pe.shape == (1, H, P)

    Ktot = Kc + Kl
    Kp = ((Ktot + 127) // 128) * 128          # lane-pad key axis to 128 multiple

    # fold the 1/sqrt(H) scale once into Q (also scales PE = Q @ key_pe)
    scale = 1.0 / math.sqrt(H)
    qs = query * scale

    # positional logits PE = Q @ key_pe -- one tiny matmul, plain XLA
    pe = jnp.einsum('bmh,hp->bmp', qs, key_pe[0])
    # scatter PE into the absolute-column layout (pure pad/reshape glue)
    pe_c = _skew_step(pe[:, :, :C + 1], c, 0.0)    # (B, M, Kc)
    pe_l = _skew(pe[:, :, C + 1:], 0.0)            # (B, M, Kl)
    pe_full = jnp.concatenate([pe_c, pe_l], axis=-1)
    pe_full = jnp.pad(pe_full, ((0, 0), (0, 0), (0, Kp - Ktot)))
    pe_biased = pe_full + _band_bias(Mq, c, C, attn_lim, Kc, Kl, Kp)[None]

    # one concatenated, zero-padded K'/V' slab; bf16 MXU inputs
    k_cat = jnp.pad(jnp.concatenate([ckey, key], axis=1),
                    ((0, 0), (0, Kp - Ktot), (0, 0)))
    v_cat = jnp.pad(jnp.concatenate([cvalue, value], axis=1),
                    ((0, 0), (0, Kp - Ktot), (0, 0)))
    q_bf = qs.astype(jnp.bfloat16)
    k_bf = k_cat.astype(jnp.bfloat16)
    v_bf = v_cat.astype(jnp.bfloat16)

    out = pl.pallas_call(
        _seq_attn_kernel,
        out_shape=jax.ShapeDtypeStruct((B, Mq, H), query.dtype),
        grid=(1,),
        in_specs=[
            pl.BlockSpec((B, Mq, H), lambda i: (0, 0, 0)),
            pl.BlockSpec((B, Kp, H), lambda i: (0, 0, 0)),
            pl.BlockSpec((B, Kp, H), lambda i: (0, 0, 0)),
            pl.BlockSpec((B, Mq, Kp), lambda i: (0, 0, 0)),
        ],
        out_specs=pl.BlockSpec((B, Mq, H), lambda i: (0, 0, 0)),
        compiler_params=pltpu.CompilerParams(
            dimension_semantics=("arbitrary",)),
    )(q_bf, k_bf, v_bf, pe_biased)

    aux_loss = 0.0
    return out, aux_loss


# ---------------- pure-JAX reference (mirrors the PyTorch forward, f32) ----------
def reference_forward(query, key, value, ckey, cvalue, key_pe, *,
                      compress_rate, compress_size, attn_lim, head_dim):
    c = compress_rate
    C = compress_size // compress_rate
    attn = jnp.einsum('bmh,bkh->bmk', query, key)
    attn = _unskew(attn)
    cattn = jnp.einsum('bmh,bkh->bmk', query, ckey)
    cattn = _unskew_step(cattn, c)
    attn = jnp.concatenate([cattn, attn], axis=-1)
    attn = attn + jnp.matmul(query, key_pe)
    attn = attn / math.sqrt(head_dim)
    attn = jax.nn.softmax(attn, axis=-1)
    cattn = attn[:, :, :C + 1]
    attn = attn[:, :, C + 1:]
    cattn = _skew_step(cattn, c, 0.0)
    out = jnp.matmul(cattn, cvalue) + jnp.matmul(_skew(attn, 0.0), value)
    return out


if __name__ == "__main__":
    Kl = ATTN_LIM + M
    Kc = C_SLOTS + M // COMPRESS_RATE
    P = ATTN_LIM + C_SLOTS + 1

    k0 = jax.random.PRNGKey(0)
    ks = jax.random.split(k0, 6)
    query = jax.random.normal(ks[0], (BATCH, M, HEAD_DIM), jnp.float32)
    key_t = jax.random.normal(ks[1], (BATCH, Kl, HEAD_DIM), jnp.float32)
    value = jax.random.normal(ks[2], (BATCH, Kl, HEAD_DIM), jnp.float32)
    ckey = jax.random.normal(ks[3], (BATCH, Kc, HEAD_DIM), jnp.float32)
    cvalue = jax.random.normal(ks[4], (BATCH, Kc, HEAD_DIM), jnp.float32)
    # deterministic parameter init for key_pe (shape from pos_emb in __init__)
    key_pe = jax.random.normal(ks[5], (1, HEAD_DIM, P), jnp.float32) / math.sqrt(HEAD_DIM)

    out, aux_loss = seq_attention_forward(
        query, key_t, value, ckey, cvalue, key_pe,
        compress_rate=COMPRESS_RATE, compress_size=COMPRESS_SIZE,
        attn_lim=ATTN_LIM)
    out = jax.block_until_ready(out)

    ref = reference_forward(
        query, key_t, value, ckey, cvalue, key_pe,
        compress_rate=COMPRESS_RATE, compress_size=COMPRESS_SIZE,
        attn_lim=ATTN_LIM, head_dim=HEAD_DIM)

    assert out.shape == (BATCH, M, HEAD_DIM)
    assert bool(jnp.all(jnp.isfinite(out)))
    # tolerance covers bf16 MXU inputs + approx reciprocal vs the pure-f32 reference
    assert bool(jnp.allclose(out, ref, atol=5e-2, rtol=5e-2)), \
        f"max abs diff {float(jnp.max(jnp.abs(out - ref)))}"
    print("KERNEL_OK")
</pallas_src>

<mosaic_0001>
module attributes {stable_mosaic.version = 11 : i64} {
  func.func @_seq_attn_kernel(%arg0: i32, %arg1: memref<2x32x32xbf16, #tpu.memory_space<vmem>>, %arg2: memref<2x128x32xbf16, #tpu.memory_space<vmem>>, %arg3: memref<2x128x32xbf16, #tpu.memory_space<vmem>>, %arg4: memref<2x32x128xf32, #tpu.memory_space<vmem>>, %arg5: memref<2x32x32xf32, #tpu.memory_space<vmem>>) attributes {dimension_semantics = [#tpu.dimension_semantics<arbitrary>], iteration_bounds = array<i64: 1>, scalar_prefetch = 0 : i64, scratch_operands = 0 : i64, tpu.core_type = #tpu.core_type<tc>, window_params = [{pipeline_mode = #tpu.pipeline_mode<synchronous>, transform_indices = @transform_0, window_bounds = array<i64: 2, 32, 32>}, {pipeline_mode = #tpu.pipeline_mode<synchronous>, transform_indices = @transform_1, window_bounds = array<i64: 2, 128, 32>}, {pipeline_mode = #tpu.pipeline_mode<synchronous>, transform_indices = @transform_2, window_bounds = array<i64: 2, 128, 32>}, {pipeline_mode = #tpu.pipeline_mode<synchronous>, transform_indices = @transform_3, window_bounds = array<i64: 2, 32, 128>}, {pipeline_mode = #tpu.pipeline_mode<synchronous>, transform_indices = @transform_4, window_bounds = array<i64: 2, 32, 32>}]} {
    %c0 = arith.constant 0 : index
    %c0_0 = arith.constant 0 : index
    %c0_1 = arith.constant 0 : index
    %0 = vector.load %arg1[%c0, %c0_0, %c0_1] : memref<2x32x32xbf16, #tpu.memory_space<vmem>>, vector<2x32x32xbf16>
    %c0_2 = arith.constant 0 : index
    %c0_3 = arith.constant 0 : index
    %c0_4 = arith.constant 0 : index
    %1 = vector.load %arg2[%c0_2, %c0_3, %c0_4] : memref<2x128x32xbf16, #tpu.memory_space<vmem>>, vector<2x128x32xbf16>
    %c0_5 = arith.constant 0 : index
    %c0_6 = arith.constant 0 : index
    %c0_7 = arith.constant 0 : index
    %2 = vector.load %arg3[%c0_5, %c0_6, %c0_7] : memref<2x128x32xbf16, #tpu.memory_space<vmem>>, vector<2x128x32xbf16>
    %c0_8 = arith.constant 0 : index
    %c0_9 = arith.constant 0 : index
    %c0_10 = arith.constant 0 : index
    %3 = vector.load %arg4[%c0_8, %c0_9, %c0_10] : memref<2x32x128xf32, #tpu.memory_space<vmem>>, vector<2x32x128xf32>
    "tpu.trace_start"() <{level = 10 : i32, message = "bmh,bkh->bmk"}> : () -> ()
    %cst = arith.constant dense<0.000000e+00> : vector<2x32x128xf32>
    %4 = tpu.matmul %0, %1, %cst {dimension_numbers = #tpu.dot_dimension_numbers<[2], [2], [1], [1], [0, 0, 0, 1, 1, 1], [0], [0]>} : vector<2x32x32xbf16>, vector<2x128x32xbf16>, vector<2x32x128xf32> -> vector<2x32x128xf32>
    "tpu.trace_stop"() : () -> ()
    %5 = arith.addf %4, %3 : vector<2x32x128xf32>
    %cst_11 = arith.constant dense<0xFF800000> : vector<2x32xf32>
    %6 = vector.multi_reduction <maximumf>, %5, %cst_11 [2] : vector<2x32x128xf32> to vector<2x32xf32>
    %7 = vector.shape_cast %6 : vector<2x32xf32> to vector<2x32x1xf32>
    %8 = vector.broadcast %7 : vector<2x32x1xf32> to vector<2x32x128xf32>
    %9 = arith.subf %5, %8 : vector<2x32x128xf32>
    %10 = math.exp %9 : vector<2x32x128xf32>
    %cst_12 = arith.constant dense<0.000000e+00> : vector<2x32xf32>
    %11 = vector.multi_reduction <add>, %10, %cst_12 [2] : vector<2x32x128xf32> to vector<2x32xf32>
    %12 = vector.shape_cast %11 : vector<2x32xf32> to vector<2x32x1xf32>
    %13 = arith.truncf %10 : vector<2x32x128xf32> to vector<2x32x128xbf16>
    "tpu.trace_start"() <{level = 10 : i32, message = "bmk,bkh->bmh"}> : () -> ()
    %cst_13 = arith.constant dense<0.000000e+00> : vector<2x32x32xf32>
    %14 = tpu.matmul %13, %2, %cst_13 {dimension_numbers = #tpu.dot_dimension_numbers<[2], [1], [1], [2], [0, 0, 0, 1, 1, 2], [0], [0]>} : vector<2x32x128xbf16>, vector<2x128x32xbf16>, vector<2x32x32xf32> -> vector<2x32x32xf32>
    "tpu.trace_stop"() : () -> ()
    %15 = tpu.reciprocal %12 {approx = true} : vector<2x32x1xf32> -> vector<2x32x1xf32>
    %16 = vector.broadcast %15 : vector<2x32x1xf32> to vector<2x32x32xf32>
    %17 = arith.mulf %14, %16 : vector<2x32x32xf32>
    %c0_14 = arith.constant 0 : index
    %c0_15 = arith.constant 0 : index
    %c0_16 = arith.constant 0 : index
    %18 = vector.load %arg5[%c0_14, %c0_15, %c0_16] : memref<2x32x32xf32, #tpu.memory_space<vmem>>, vector<2x32x32xf32>
    tpu.vector_store %arg5[%c0_14, %c0_15, %c0_16], %17 {strides = array<i32>} : memref<2x32x32xf32, #tpu.memory_space<vmem>>, vector<2x32x32xf32>,
    return
  }
  func.func @transform_0(%arg0: i32) -> (i32, i32, i32) {
    %c0_i32 = arith.constant 0 : i32
    %c0_i32_0 = arith.constant 0 : i32
    %c0_i32_1 = arith.constant 0 : i32
    %c0_i32_2 = arith.constant 0 : i32
    return %c0_i32, %c0_i32_0, %c0_i32_1 : i32, i32, i32
  }
  func.func @transform_1(%arg0: i32) -> (i32, i32, i32) {
    %c0_i32 = arith.constant 0 : i32
    %c0_i32_0 = arith.constant 0 : i32
    %c0_i32_1 = arith.constant 0 : i32
    %c0_i32_2 = arith.constant 0 : i32
    return %c0_i32, %c0_i32_0, %c0_i32_1 : i32, i32, i32
  }
  func.func @transform_2(%arg0: i32) -> (i32, i32, i32) {
    %c0_i32 = arith.constant 0 : i32
    %c0_i32_0 = arith.constant 0 : i32
    %c0_i32_1 = arith.constant 0 : i32
    %c0_i32_2 = arith.constant 0 : i32
    return %c0_i32, %c0_i32_0, %c0_i32_1 : i32, i32, i32
  }
  func.func @transform_3(%arg0: i32) -> (i32, i32, i32) {
    %c0_i32 = arith.constant 0 : i32
    %c0_i32_0 = arith.constant 0 : i32
    %c0_i32_1 = arith.constant 0 : i32
    %c0_i32_2 = arith.constant 0 : i32
    return %c0_i32, %c0_i32_0, %c0_i32_1 : i32, i32, i32
  }
  func.func @transform_4(%arg0: i32) -> (i32, i32, i32) {
    %c0_i32 = arith.constant 0 : i32
    %c0_i32_0 = arith.constant 0 : i32
    %c0_i32_1 = arith.constant 0 : i32
    %c0_i32_2 = arith.constant 0 : i32
    return %c0_i32, %c0_i32_0, %c0_i32_1 : i32, i32, i32
  }
}

</mosaic_0001>

<llo_original>
// kernel: tpu_custom_call.1
$region0: #{tpu_custom_call.1}
  #allocation0 [shape = 'u32[]', space=smem, size = 0x4, offset = 0x4, fixed_abs, tag = 'smem constant byte address 0x4 - core index']
  #allocation1 [shape = 'u32[144,128]{1,0:T(1,128)}', space=vmem, size = 0x12000, scoped, tag = 'internal scratch']
  %s0 = inlined_call_operand.vmem [shape: bf16[2,32,32], index: 0, kind: input, shape index: {}]
  %s1 = inlined_call_operand.vmem [shape: bf16[2,128,32], index: 1, kind: input, shape index: {}]
  %s2 = inlined_call_operand.vmem [shape: bf16[2,128,32], index: 2, kind: input, shape index: {}]
  %s3 = inlined_call_operand.vmem [shape: f32[2,32,128], index: 3, kind: input, shape index: {}]
  %s4 = inlined_call_operand.hbm [shape: f32[2,32,32], index: 4, kind: output, shape index: {}]
  %s5 = sld [smem:[#allocation0]]
  $region26: #{tpu_custom_call.1} parent=0
    _
  %s7 = ssub.s32 1, %s5
  %s8 = scalar_select 0, %s7, %s5
  $region1: #{tpu_custom_call.1} parent=0
    #allocation2 [shape = 'u8[32768]{0}', space=vmem, size = 0x8000, scoped, tag = 'output window, operand 0, single buffered']
    #allocation3 [shape = 's32[1]{0}', space=sflag, size = 0x4, scoped, tag = 'scoped memory for tpu_custom_call.1']
    %9 = vsyncpa [#allocation3], 0
    // Predicated region
    $region2: #{tpu_custom_call.1} parent=1 // pred_check
      _
    $region3: #{tpu_custom_call.1} parent=1 // pred_check_branch
      %11 = sbr.rel (0) target = $region5
    $region4: #{tpu_custom_call.1} parent=1 // pred_region
      _
    $region5: #{tpu_custom_call.1} parent=1 // pred_fallthru
      _
    // Predicated region
    $region6: #{tpu_custom_call.1} parent=1 // pred_check
      _
    $region7: #{tpu_custom_call.1} parent=1 // pred_check_branch
      %13 = sbr.rel (0) target = $region9
    $region8: #{tpu_custom_call.1} parent=1 // pred_region
      _
    $region9: #{tpu_custom_call.1} parent=1 // pred_fallthru
      _
    // Predicated region
    $region10: #{tpu_custom_call.1} parent=1 // pred_check
      _
    $region11: #{tpu_custom_call.1} parent=1 // pred_check_branch
      %15 = sbr.rel (0) target = $region13
    $region12: #{tpu_custom_call.1} parent=1 // pred_region
      _
    $region13: #{tpu_custom_call.1} parent=1 // pred_fallthru
      _
    // Predicated region
    $region14: #{tpu_custom_call.1} parent=1 // pred_check
      _
    $region15: #{tpu_custom_call.1} parent=1 // pred_check_branch
      %17 = sbr.rel (0) target = $region17
    $region16: #{tpu_custom_call.1} parent=1 // pred_region
      _
    $region17: #{tpu_custom_call.1} parent=1 // pred_fallthru
      _
    %v19 = vld [vmem:[%s0] sm:$0xf]
    %v20 = vld [vmem:[%s0 + $0x4] sm:$0xf]
    %v21 = vld [vmem:[%s0 + $0x8] sm:$0xf]
    %v22 = vld [vmem:[%s0 + $0xc] sm:$0xf]
    %v23 = vld [vmem:[%s0 + $0x10] sm:$0xf]
    %v24 = vld [vmem:[%s0 + $0x14] sm:$0xf]
    %v25 = vld [vmem:[%s0 + $0x18] sm:$0xf]
    %v26 = vld [vmem:[%s0 + $0x1c] sm:$0xf]
    %v27 = vld [vmem:[%s1] sm:$0xf]
    %v28 = vld [vmem:[%s1 + $0x4] sm:$0xf]
    %v29 = vld [vmem:[%s1 + $0x8] sm:$0xf]
    %v30 = vld [vmem:[%s1 + $0xc] sm:$0xf]
    %v31 = vld [vmem:[%s1 + $0x10] sm:$0xf]
    %v32 = vld [vmem:[%s1 + $0x14] sm:$0xf]
    %v33 = vld [vmem:[%s1 + $0x18] sm:$0xf]
    %v34 = vld [vmem:[%s1 + $0x1c] sm:$0xf]
    %v35 = vld [vmem:[%s1 + $0x20] sm:$0xf]
    %v36 = vld [vmem:[%s1 + $0x24] sm:$0xf]
    %v37 = vld [vmem:[%s1 + $0x28] sm:$0xf]
    %v38 = vld [vmem:[%s1 + $0x2c] sm:$0xf]
    %v39 = vld [vmem:[%s1 + $0x30] sm:$0xf]
    %v40 = vld [vmem:[%s1 + $0x34] sm:$0xf]
    %v41 = vld [vmem:[%s1 + $0x38] sm:$0xf]
    %v42 = vld [vmem:[%s1 + $0x3c] sm:$0xf]
    %v43 = vld [vmem:[%s1 + $0x40] sm:$0xf]
    %v44 = vld [vmem:[%s1 + $0x44] sm:$0xf]
    %v45 = vld [vmem:[%s1 + $0x48] sm:$0xf]
    %v46 = vld [vmem:[%s1 + $0x4c] sm:$0xf]
    %v47 = vld [vmem:[%s1 + $0x50] sm:$0xf]
    %v48 = vld [vmem:[%s1 + $0x54] sm:$0xf]
    %v49 = vld [vmem:[%s1 + $0x58] sm:$0xf]
    %v50 = vld [vmem:[%s1 + $0x5c] sm:$0xf]
    %v51 = vld [vmem:[%s1 + $0x60] sm:$0xf]
    %v52 = vld [vmem:[%s1 + $0x64] sm:$0xf]
    %v53 = vld [vmem:[%s1 + $0x68] sm:$0xf]
    %v54 = vld [vmem:[%s1 + $0x6c] sm:$0xf]
    %v55 = vld [vmem:[%s1 + $0x70] sm:$0xf]
    %v56 = vld [vmem:[%s1 + $0x74] sm:$0xf]
    %v57 = vld [vmem:[%s1 + $0x78] sm:$0xf]
    %v58 = vld [vmem:[%s1 + $0x7c] sm:$0xf]
    %v59 = vld [vmem:[%s2] sm:$0xf]
    %v60 = vld [vmem:[%s2 + $0x4] sm:$0xf]
    %v61 = vld [vmem:[%s2 + $0x8] sm:$0xf]
    %v62 = vld [vmem:[%s2 + $0xc] sm:$0xf]
    %v63 = vld [vmem:[%s2 + $0x10] sm:$0xf]
    %v64 = vld [vmem:[%s2 + $0x14] sm:$0xf]
    %v65 = vld [vmem:[%s2 + $0x18] sm:$0xf]
    %v66 = vld [vmem:[%s2 + $0x1c] sm:$0xf]
    %v67 = vld [vmem:[%s2 + $0x20] sm:$0xf]
    %v68 = vld [vmem:[%s2 + $0x24] sm:$0xf]
    %v69 = vld [vmem:[%s2 + $0x28] sm:$0xf]
    %v70 = vld [vmem:[%s2 + $0x2c] sm:$0xf]
    %v71 = vld [vmem:[%s2 + $0x30] sm:$0xf]
    %v72 = vld [vmem:[%s2 + $0x34] sm:$0xf]
    %v73 = vld [vmem:[%s2 + $0x38] sm:$0xf]
    %v74 = vld [vmem:[%s2 + $0x3c] sm:$0xf]
    %v75 = vld [vmem:[%s2 + $0x40] sm:$0xf]
    %v76 = vld [vmem:[%s2 + $0x44] sm:$0xf]
    %v77 = vld [vmem:[%s2 + $0x48] sm:$0xf]
    %v78 = vld [vmem:[%s2 + $0x4c] sm:$0xf]
    %v79 = vld [vmem:[%s2 + $0x50] sm:$0xf]
    %v80 = vld [vmem:[%s2 + $0x54] sm:$0xf]
    %v81 = vld [vmem:[%s2 + $0x58] sm:$0xf]
    %v82 = vld [vmem:[%s2 + $0x5c] sm:$0xf]
    %v83 = vld [vmem:[%s2 + $0x60] sm:$0xf]
    %v84 = vld [vmem:[%s2 + $0x64] sm:$0xf]
    %v85 = vld [vmem:[%s2 + $0x68] sm:$0xf]
    %v86 = vld [vmem:[%s2 + $0x6c] sm:$0xf]
    %v87 = vld [vmem:[%s2 + $0x70] sm:$0xf]
    %v88 = vld [vmem:[%s2 + $0x74] sm:$0xf]
    %v89 = vld [vmem:[%s2 + $0x78] sm:$0xf]
    %v90 = vld [vmem:[%s2 + $0x7c] sm:$0xf]
    %v91 = vld [vmem:[%s3] sm:$0xff]
    %v92 = vld [vmem:[%s3 + $0x8] sm:$0xff]
    %v93 = vld [vmem:[%s3 + $0x10] sm:$0xff]
    %v94 = vld [vmem:[%s3 + $0x18] sm:$0xff]
    %v95 = vld [vmem:[%s3 + $0x20] sm:$0xff]
    %v96 = vld [vmem:[%s3 + $0x28] sm:$0xff]
    %v97 = vld [vmem:[%s3 + $0x30] sm:$0xff]
    %v98 = vld [vmem:[%s3 + $0x38] sm:$0xff]
    %v103 = vunpack.c.l.b16 %v19
    %v104 = vunpack.c.l.b16 %v20
    %v105 = vunpack.c.l.b16 %v21
    %v106 = vunpack.c.l.b16 %v22
    %v107 = vpack.c.b16 %v104, %v103
    %v108 = vpack.c.b16 %v106, %v105
    %v125 = vunpack.c.l.b16 %v27
    %v126 = vunpack.c.l.b16 %v28
    %v127 = vunpack.c.l.b16 %v29
    %v128 = vunpack.c.l.b16 %v30
    %v129 = vunpack.c.l.b16 %v31
    %v130 = vunpack.c.l.b16 %v32
    %v131 = vunpack.c.l.b16 %v33
    %v132 = vunpack.c.l.b16 %v34
    %v133 = vunpack.c.l.b16 %v35
    %v134 = vunpack.c.l.b16 %v36
    %v135 = vunpack.c.l.b16 %v37
    %v136 = vunpack.c.l.b16 %v38
    %v137 = vunpack.c.l.b16 %v39
    %v138 = vunpack.c.l.b16 %v40
    %v139 = vunpack.c.l.b16 %v41
    %v140 = vunpack.c.l.b16 %v42
    %v141 = vpack.c.b16 %v126, %v125
    %v142 = vpack.c.b16 %v128, %v127
    %v143 = vpack.c.b16 %v130, %v129
    %v144 = vpack.c.b16 %v132, %v131
    %v145 = vpack.c.b16 %v134, %v133
    %v146 = vpack.c.b16 %v136, %v135
    %v147 = vpack.c.b16 %v138, %v137
    %v148 = vpack.c.b16 %v140, %v139
    %vm149 = vcmask 261120
    %v151 = vsel %vm149, %v107, 0
    %v154 = vsel %vm149, %v108, 0
    %v157 = vsel %vm149, %v141, 0
    %v160 = vsel %vm149, %v142, 0
    %v163 = vsel %vm149, %v143, 0
    %v166 = vsel %vm149, %v144, 0
    %v169 = vsel %vm149, %v145, 0
    %v172 = vsel %vm149, %v146, 0
    %v175 = vsel %vm149, %v147, 0
    %v178 = vsel %vm149, %v148, 0
    %180 = vmatprep.subr.bf16.mxu0 0
    %181 = vmatpush1.bf16.xpose.msra.mxu0 %v157
    %182 = vmatprep.subr.bf16.mxu0 0
    %183 = vmatpush1.bf16.xpose.msra.mxu0 %v160
    %184 = vmatprep.subr.bf16.mxu0 0
    %185 = vmatpush1.bf16.xpose.msra.mxu0 %v163
    %186 = vmatprep.subr.bf16.mxu0 0
    %187 = vmatpush1.bf16.xpose.msra.mxu0 %v166
    %188 = vmatprep.subr.bf16.mxu0 0
    %189 = vmatpush1.bf16.xpose.msra.mxu0 %v169
    %190 = vmatprep.subr.bf16.mxu0 0
    %191 = vmatpush1.bf16.xpose.msra.mxu0 %v172
    %192 = vmatprep.subr.bf16.mxu0 0
    %193 = vmatpush1.bf16.xpose.msra.mxu0 %v175
    %194 = vmatprep.subr.bf16.mxu0 0
    %195 = vmatpush1.bf16.xpose.msra.mxu0 %v178
    %196 = vmatprep.subr.bf16.mxu0 0
    %197 = vmatpush1.bf16.xpose.msra.mxu0 0
    %198 = vmatprep.subr.bf16.mxu0 0
    %199 = vmatpush1.bf16.xpose.msra.mxu0 0
    %200 = vmatprep.subr.bf16.mxu0 0
    %201 = vmatpush1.bf16.xpose.msra.mxu0 0
    %202 = vmatprep.subr.bf16.mxu0 0
    %203 = vmatpush1.bf16.xpose.msra.mxu0 0
    %204 = vmatprep.subr.bf16.mxu0 0
    %205 = vmatpush1.bf16.xpose.msra.mxu0 0
    %206 = vmatprep.subr.bf16.mxu0 0
    %207 = vmatpush1.bf16.xpose.msra.mxu0 0
    %208 = vmatprep.subr.bf16.mxu0 0
    %209 = vmatpush1.bf16.xpose.msra.mxu0 0
    %210 = vmatprep.subr.bf16.mxu0 0
    %211 = vmatpush1.bf16.xpose.msra.mxu0 0
    %212 = vmatprep.mubr.bf16.mxu0 0
    %213 = vmatmul.mubr.bf16.gmra.mrb[0].mxu0 %v151
    %v214 = vpop.f32.mrb[0].mxu0
    %v215 = vadd.f32 %v91, %v214
    %v216 = vpop.f32.mrb[0].mxu0
    %v217 = vpop.f32.mrb[0].mxu0
    %v218 = vadd.f32 %v92, %v217
    %v219 = vpop.f32.mrb[0].mxu0
    %220 = vmatprep.mubr.bf16.mxu0 0
    %221 = vmatmul.mubr.bf16.gmra.mrb[0].mxu0 %v154
    %v222 = vpop.f32.mrb[0].mxu0
    %v223 = vadd.f32 %v93, %v222
    %v224 = vpop.f32.mrb[0].mxu0
    %v225 = vpop.f32.mrb[0].mxu0
    %v226 = vadd.f32 %v94, %v225
    %v227 = vpop.f32.mrb[0].mxu0
    %228 = vdwg.mxu0
    %v233 = vunpack.c.l.b16 %v23
    %v234 = vunpack.c.l.b16 %v24
    %v235 = vunpack.c.l.b16 %v25
    %v236 = vunpack.c.l.b16 %v26
    %v237 = vpack.c.b16 %v234, %v233
    %v238 = vpack.c.b16 %v236, %v235
    %v255 = vunpack.c.l.b16 %v43
    %v256 = vunpack.c.l.b16 %v44
    %v257 = vunpack.c.l.b16 %v45
    %v258 = vunpack.c.l.b16 %v46
    %v259 = vunpack.c.l.b16 %v47
    %v260 = vunpack.c.l.b16 %v48
    %v261 = vunpack.c.l.b16 %v49
    %v262 = vunpack.c.l.b16 %v50
    %v263 = vunpack.c.l.b16 %v51
    %v264 = vunpack.c.l.b16 %v52
    %v265 = vunpack.c.l.b16 %v53
    %v266 = vunpack.c.l.b16 %v54
    %v267 = vunpack.c.l.b16 %v55
    %v268 = vunpack.c.l.b16 %v56
    %v269 = vunpack.c.l.b16 %v57
    %v270 = vunpack.c.l.b16 %v58
    %v271 = vpack.c.b16 %v256, %v255
    %v272 = vpack.c.b16 %v258, %v257
    %v273 = vpack.c.b16 %v260, %v259
    %v274 = vpack.c.b16 %v262, %v261
    %v275 = vpack.c.b16 %v264, %v263
    %v276 = vpack.c.b16 %v266, %v265
    %v277 = vpack.c.b16 %v268, %v267
    %v278 = vpack.c.b16 %v270, %v269
    %v280 = vsel %vm149, %v237, 0
    %v283 = vsel %vm149, %v238, 0
    %v286 = vsel %vm149, %v271, 0
    %v289 = vsel %vm149, %v272, 0
    %v292 = vsel %vm149, %v273, 0
    %v295 = vsel %vm149, %v274, 0
    %v298 = vsel %vm149, %v275, 0
    %v301 = vsel %vm149, %v276, 0
    %v304 = vsel %vm149, %v277, 0
    %v307 = vsel %vm149, %v278, 0
    %309 = vmatprep.subr.bf16.mxu0 0
    %310 = vmatpush1.bf16.xpose.msra.mxu0 %v286
    %311 = vmatprep.subr.bf16.mxu0 0
    %312 = vmatpush1.bf16.xpose.msra.mxu0 %v289
    %313 = vmatprep.subr.bf16.mxu0 0
    %314 = vmatpush1.bf16.xpose.msra.mxu0 %v292
    %315 = vmatprep.subr.bf16.mxu0 0
    %316 = vmatpush1.bf16.xpose.msra.mxu0 %v295
    %317 = vmatprep.subr.bf16.mxu0 0
    %318 = vmatpush1.bf16.xpose.msra.mxu0 %v298
    %319 = vmatprep.subr.bf16.mxu0 0
    %320 = vmatpush1.bf16.xpose.msra.mxu0 %v301
    %321 = vmatprep.subr.bf16.mxu0 0
    %322 = vmatpush1.bf16.xpose.msra.mxu0 %v304
    %323 = vmatprep.subr.bf16.mxu0 0
    %324 = vmatpush1.bf16.xpose.msra.mxu0 %v307
    %325 = vmatprep.subr.bf16.mxu0 0
    %326 = vmatpush1.bf16.xpose.msra.mxu0 0
    %327 = vmatprep.subr.bf16.mxu0 0
    %328 = vmatpush1.bf16.xpose.msra.mxu0 0
    %329 = vmatprep.subr.bf16.mxu0 0
    %330 = vmatpush1.bf16.xpose.msra.mxu0 0
    %331 = vmatprep.subr.bf16.mxu0 0
    %332 = vmatpush1.bf16.xpose.msra.mxu0 0
    %333 = vmatprep.subr.bf16.mxu0 0
    %334 = vmatpush1.bf16.xpose.msra.mxu0 0
    %335 = vmatprep.subr.bf16.mxu0 0
    %336 = vmatpush1.bf16.xpose.msra.mxu0 0
    %337 = vmatprep.subr.bf16.mxu0 0
    %338 = vmatpush1.bf16.xpose.msra.mxu0 0
    %339 = vmatprep.subr.bf16.mxu0 0
    %340 = vmatpush1.bf16.xpose.msra.mxu0 0
    %341 = vmatprep.mubr.bf16.mxu0 0
    %342 = vmatmul.mubr.bf16.gmra.mrb[0].mxu0 %v280
    %v343 = vpop.f32.mrb[0].mxu0
    %v344 = vadd.f32 %v95, %v343
    %v345 = vpop.f32.mrb[0].mxu0
    %v346 = vpop.f32.mrb[0].mxu0
    %v347 = vadd.f32 %v96, %v346
    %v348 = vpop.f32.mrb[0].mxu0
    %349 = vmatprep.mubr.bf16.mxu0 0
    %350 = vmatmul.mubr.bf16.gmra.mrb[0].mxu0 %v283
    %v351 = vpop.f32.mrb[0].mxu0
    %v352 = vadd.f32 %v97, %v351
    %v353 = vpop.f32.mrb[0].mxu0
    %v354 = vpop.f32.mrb[0].mxu0
    %v355 = vadd.f32 %v98, %v354
    %v356 = vpop.f32.mrb[0].mxu0
    %357 = vdwg.mxu0
    %358 = vmax.xlane.f32.xlu0 %v215
    %v359 = vpop.xlane.xlu0 %358
    %360 = vmax.xlane.f32.xlu0 %v218
    %v361 = vpop.xlane.xlu0 %360
    %362 = vmax.xlane.f32.xlu0 %v223
    %v363 = vpop.xlane.xlu0 %362
    %364 = vmax.xlane.f32.xlu0 %v226
    %v365 = vpop.xlane.xlu0 %364
    %366 = vmax.xlane.f32.xlu0 %v344
    %v367 = vpop.xlane.xlu0 %366
    %368 = vmax.xlane.f32.xlu0 %v347
    %v369 = vpop.xlane.xlu0 %368
    %370 = vmax.xlane.f32.xlu0 %v352
    %v371 = vpop.xlane.xlu0 %370
    %372 = vmax.xlane.f32.xlu0 %v355
    %v373 = vpop.xlane.xlu0 %372
    %v374 = vsub.f32 %v215, %v359
    %v375 = vsub.f32 %v218, %v361
    %v376 = vsub.f32 %v223, %v363
    %v377 = vsub.f32 %v226, %v365
    %v378 = vsub.f32 %v344, %v367
    %v379 = vsub.f32 %v347, %v369
    %v380 = vsub.f32 %v352, %v371
    %v381 = vsub.f32 %v355, %v373
    %v382 = vmul.f32 %v374, 1.442695
    %v383 = vpow.pop %v382
    %v384 = vmul.f32 %v375, 1.442695
    %v385 = vpow.pop %v384
    %v386 = vmul.f32 %v376, 1.442695
    %v387 = vpow.pop %v386
    %v388 = vmul.f32 %v377, 1.442695
    %v389 = vpow.pop %v388
    %v390 = vmul.f32 %v378, 1.442695
    %v391 = vpow.pop %v390
    %v392 = vmul.f32 %v379, 1.442695
    %v393 = vpow.pop %v392
    %v394 = vmul.f32 %v380, 1.442695
    %v395 = vpow.pop %v394
    %v396 = vmul.f32 %v381, 1.442695
    %v397 = vpow.pop %v396
    %398 = vadd.xlane.f32.xlu0 %v383
    %v399 = vpop.xlane.xlu0 %398
    %400 = vadd.xlane.f32.xlu0 %v385
    %v401 = vpop.xlane.xlu0 %400
    %402 = vadd.xlane.f32.xlu0 %v387
    %v403 = vpop.xlane.xlu0 %402
    %404 = vadd.xlane.f32.xlu0 %v389
    %v405 = vpop.xlane.xlu0 %404
    %406 = vadd.xlane.f32.xlu0 %v391
    %v407 = vpop.xlane.xlu0 %406
    %408 = vadd.xlane.f32.xlu0 %v393
    %v409 = vpop.xlane.xlu0 %408
    %410 = vadd.xlane.f32.xlu0 %v395
    %v411 = vpop.xlane.xlu0 %410
    %412 = vadd.xlane.f32.xlu0 %v397
    %v413 = vpop.xlane.xlu0 %412
    %v414 = vpack.c.bf16 %v385, %v383
    %v415 = vpack.c.bf16 %v389, %v387
    %v416 = vpack.c.bf16 %v393, %v391
    %v417 = vpack.c.bf16 %v397, %v395
    %v434 = vunpack.c.l.b16 %v59
    %v435 = vunpack.c.l.b16 %v60
    %v436 = vunpack.c.l.b16 %v61
    %v437 = vunpack.c.l.b16 %v62
    %v438 = vunpack.c.l.b16 %v63
    %v439 = vunpack.c.l.b16 %v64
    %v440 = vunpack.c.l.b16 %v65
    %v441 = vunpack.c.l.b16 %v66
    %v442 = vunpack.c.l.b16 %v67
    %v443 = vunpack.c.l.b16 %v68
    %v444 = vunpack.c.l.b16 %v69
    %v445 = vunpack.c.l.b16 %v70
    %v446 = vunpack.c.l.b16 %v71
    %v447 = vunpack.c.l.b16 %v72
    %v448 = vunpack.c.l.b16 %v73
    %v449 = vunpack.c.l.b16 %v74
    %v450 = vpack.c.b16 %v435, %v434
    %v451 = vpack.c.b16 %v437, %v436
    %v452 = vpack.c.b16 %v439, %v438
    %v453 = vpack.c.b16 %v441, %v440
    %v454 = vpack.c.b16 %v443, %v442
    %v455 = vpack.c.b16 %v445, %v444
    %v456 = vpack.c.b16 %v447, %v446
    %v457 = vpack.c.b16 %v449, %v448
    %466 = vmatprep.subr.bf16.mxu0 0
    %467 = vmatpush1.bf16.msra.mxu0 %v450
    %468 = vmatprep.subr.bf16.mxu0 0
    %469 = vmatpush1.bf16.msra.mxu0 %v451
    %470 = vmatprep.subr.bf16.mxu0 0
    %471 = vmatpush1.bf16.msra.mxu0 %v452
    %472 = vmatprep.subr.bf16.mxu0 0
    %473 = vmatpush1.bf16.msra.mxu0 %v453
    %474 = vmatprep.subr.bf16.mxu0 0
    %475 = vmatpush1.bf16.msra.mxu0 %v454
    %476 = vmatprep.subr.bf16.mxu0 0
    %477 = vmatpush1.bf16.msra.mxu0 %v455
    %478 = vmatprep.subr.bf16.mxu0 0
    %479 = vmatpush1.bf16.msra.mxu0 %v456
    %480 = vmatprep.subr.bf16.mxu0 0
    %481 = vmatpush1.bf16.msra.mxu0 %v457
    %482 = vmatprep.subr.bf16.mxu0 0
    %483 = vmatpush1.bf16.msra.mxu0 0
    %484 = vmatprep.subr.bf16.mxu0 0
    %485 = vmatpush1.bf16.msra.mxu0 0
    %486 = vmatprep.subr.bf16.mxu0 0
    %487 = vmatpush1.bf16.msra.mxu0 0
    %488 = vmatprep.subr.bf16.mxu0 0
    %489 = vmatpush1.bf16.msra.mxu0 0
    %490 = vmatprep.subr.bf16.mxu0 0
    %491 = vmatpush1.bf16.msra.mxu0 0
    %492 = vmatprep.subr.bf16.mxu0 0
    %493 = vmatpush1.bf16.msra.mxu0 0
    %494 = vmatprep.subr.bf16.mxu0 0
    %495 = vmatpush1.bf16.msra.mxu0 0
    %496 = vmatprep.subr.bf16.mxu0 0
    %497 = vmatpush1.bf16.msra.mxu0 0
    %498 = vmatprep.mubr.bf16.mxu0 0
    %499 = vmatmul.mubr.bf16.gmra.mrb[0].mxu0 %v414
    %v500 = vpop.f32.mrb[0].mxu0
    %v501 = vadd.f32 0.0, %v500
    %v502 = vpop.f32.mrb[0].mxu0
    %v503 = vpop.f32.mrb[0].mxu0
    %v504 = vadd.f32 0.0, %v503
    %v505 = vpop.f32.mrb[0].mxu0
    %506 = vmatprep.mubr.bf16.mxu0 0
    %507 = vmatmul.mubr.bf16.gmra.mrb[0].mxu0 %v415
    %v508 = vpop.f32.mrb[0].mxu0
    %v509 = vadd.f32 0.0, %v508
    %v510 = vpop.f32.mrb[0].mxu0
    %v511 = vpop.f32.mrb[0].mxu0
    %v512 = vadd.f32 0.0, %v511
    %v513 = vpop.f32.mrb[0].mxu0
    %514 = vdwg.mxu0
    %v531 = vunpack.c.l.b16 %v75
    %v532 = vunpack.c.l.b16 %v76
    %v533 = vunpack.c.l.b16 %v77
    %v534 = vunpack.c.l.b16 %v78
    %v535 = vunpack.c.l.b16 %v79
    %v536 = vunpack.c.l.b16 %v80
    %v537 = vunpack.c.l.b16 %v81
    %v538 = vunpack.c.l.b16 %v82
    %v539 = vunpack.c.l.b16 %v83
    %v540 = vunpack.c.l.b16 %v84
    %v541 = vunpack.c.l.b16 %v85
    %v542 = vunpack.c.l.b16 %v86
    %v543 = vunpack.c.l.b16 %v87
    %v544 = vunpack.c.l.b16 %v88
    %v545 = vunpack.c.l.b16 %v89
    %v546 = vunpack.c.l.b16 %v90
    %v547 = vpack.c.b16 %v532, %v531
    %v548 = vpack.c.b16 %v534, %v533
    %v549 = vpack.c.b16 %v536, %v535
    %v550 = vpack.c.b16 %v538, %v537
    %v551 = vpack.c.b16 %v540, %v539
    %v552 = vpack.c.b16 %v542, %v541
    %v553 = vpack.c.b16 %v544, %v543
    %v554 = vpack.c.b16 %v546, %v545
    %563 = vmatprep.subr.bf16.mxu0 0
    %564 = vmatpush1.bf16.msra.mxu0 %v547
    %565 = vmatprep.subr.bf16.mxu0 0
    %566 = vmatpush1.bf16.msra.mxu0 %v548
    %567 = vmatprep.subr.bf16.mxu0 0
    %568 = vmatpush1.bf16.msra.mxu0 %v549
    %569 = vmatprep.subr.bf16.mxu0 0
    %570 = vmatpush1.bf16.msra.mxu0 %v550
    %571 = vmatprep.subr.bf16.mxu0 0
    %572 = vmatpush1.bf16.msra.mxu0 %v551
    %573 = vmatprep.subr.bf16.mxu0 0
    %574 = vmatpush1.bf16.msra.mxu0 %v552
    %575 = vmatprep.subr.bf16.mxu0 0
    %576 = vmatpush1.bf16.msra.mxu0 %v553
    %577 = vmatprep.subr.bf16.mxu0 0
    %578 = vmatpush1.bf16.msra.mxu0 %v554
    %579 = vmatprep.subr.bf16.mxu0 0
    %580 = vmatpush1.bf16.msra.mxu0 0
    %581 = vmatprep.subr.bf16.mxu0 0
    %582 = vmatpush1.bf16.msra.mxu0 0
    %583 = vmatprep.subr.bf16.mxu0 0
    %584 = vmatpush1.bf16.msra.mxu0 0
    %585 = vmatprep.subr.bf16.mxu0 0
    %586 = vmatpush1.bf16.msra.mxu0 0
    %587 = vmatprep.subr.bf16.mxu0 0
    %588 = vmatpush1.bf16.msra.mxu0 0
    %589 = vmatprep.subr.bf16.mxu0 0
    %590 = vmatpush1.bf16.msra.mxu0 0
    %591 = vmatprep.subr.bf16.mxu0 0
    %592 = vmatpush1.bf16.msra.mxu0 0
    %593 = vmatprep.subr.bf16.mxu0 0
    %594 = vmatpush1.bf16.msra.mxu0 0
    %595 = vmatprep.mubr.bf16.mxu0 0
    %596 = vmatmul.mubr.bf16.gmra.mrb[0].mxu0 %v416
    %v597 = vpop.f32.mrb[0].mxu0
    %v598 = vadd.f32 0.0, %v597
    %v599 = vpop.f32.mrb[0].mxu0
    %v600 = vpop.f32.mrb[0].mxu0
    %v601 = vadd.f32 0.0, %v600
    %v602 = vpop.f32.mrb[0].mxu0
    %603 = vmatprep.mubr.bf16.mxu0 0
    %604 = vmatmul.mubr.bf16.gmra.mrb[0].mxu0 %v417
    %v605 = vpop.f32.mrb[0].mxu0
    %v606 = vadd.f32 0.0, %v605
    %v607 = vpop.f32.mrb[0].mxu0
    %v608 = vpop.f32.mrb[0].mxu0
    %v609 = vadd.f32 0.0, %v608
    %v610 = vpop.f32.mrb[0].mxu0
    %611 = vdwg.mxu0
    %v612 = vrcp.pop %v399
    %v613 = vrcp.pop %v401
    %v614 = vrcp.pop %v403
    %v615 = vrcp.pop %v405
    %v616 = vrcp.pop %v407
    %v617 = vrcp.pop %v409
    %v618 = vrcp.pop %v411
    %v619 = vrcp.pop %v413
    %v620 = vmul.f32 %v501, %v612
    %v621 = vmul.f32 %v504, %v613
    %v622 = vmul.f32 %v509, %v614
    %v623 = vmul.f32 %v512, %v615
    %v624 = vmul.f32 %v598, %v616
    %v625 = vmul.f32 %v601, %v617
    %v626 = vmul.f32 %v606, %v618
    %v627 = vmul.f32 %v609, %v619
    %628 = vst.msk [vmem:[#allocation2] sm:$0xff] %vm149, %v620
    %629 = vst.msk [vmem:[#allocation2 + $0x8] sm:$0xff] %vm149, %v621
    %630 = vst.msk [vmem:[#allocation2 + $0x10] sm:$0xff] %vm149, %v622
    %631 = vst.msk [vmem:[#allocation2 + $0x18] sm:$0xff] %vm149, %v623
    %632 = vst.msk [vmem:[#allocation2 + $0x20] sm:$0xff] %vm149, %v624
    %633 = vst.msk [vmem:[#allocation2 + $0x28] sm:$0xff] %vm149, %v625
    %634 = vst.msk [vmem:[#allocation2 + $0x30] sm:$0xff] %vm149, %v626
    %635 = vst.msk [vmem:[#allocation2 + $0x38] sm:$0xff] %vm149, %v627
    // Predicated region
    $region18: #{tpu_custom_call.1} parent=1 // pred_check
      _
    $region19: #{tpu_custom_call.1} parent=1 // pred_check_branch
      %637 = sbr.rel (0) target = $region21
    $region20: #{tpu_custom_call.1} parent=1 // pred_region
      %s639 = ssub.s32 1024, 1024
      %640 = vsyncadd [#allocation3], %s639
      %s641 = sshll.u32 [#allocation2], 4
      %s642 = int_to_ptr.vmem [resolvable:$true] %s641
      %647 = dma.vmem_to_hbm [thread:$0]  %s642, 1024, %s4, [#allocation3], 128, 128, 8
    $region21: #{tpu_custom_call.1} parent=1 // pred_fallthru
      _
    // Predicated region
    $region22: #{tpu_custom_call.1} parent=1 // pred_check
      _
    $region23: #{tpu_custom_call.1} parent=1 // pred_check_branch
      %649 = sbr.rel (0) target = $region25
    $region24: #{tpu_custom_call.1} parent=1 // pred_region
      %650 = dma.done [#allocation3], 1024
    $region25: #{tpu_custom_call.1} parent=1 // pred_fallthru
      _
    %651 = vsyncpa [#allocation3], 1

</llo_original>
